<compile_context>
chip_gen: v5e
topology: v5e:2x2
jax: 0.10.0
libtpu: 0.0.40
codegen_flags: <defaults>
</compile_context>

<pallas_src>
import jax
import jax.numpy as jnp
from jax import lax
from jax.experimental import pallas as pl
from jax.experimental.pallas import tpu as pltpu


def _round_up(x: int, m: int) -> int:
    return ((x + m - 1) // m) * m


def _vmem_capacity_bytes() -> int:
    """Generation-aware physical VMEM size (v5e/v6e: 128 MiB, v7x: 64 MiB per core)."""
    try:
        info = pltpu.get_tpu_info()
        cap = getattr(info, "vmem_capacity_bytes", None)
        if cap:
            return int(cap)
    except Exception:
        pass
    return 64 << 20  # conservative default = v7x per-core VMEM


# ---------------------------------------------------------------------------
# Path A: small vocabulary -- VMEM-resident table, chunked one-hot MXU gather.
# ---------------------------------------------------------------------------
def _embed_vmem_kernel(ids_ref, table_ref, out_ref):
    """ids_ref: VMEM (R, 128) int32; table_ref: VMEM (V, D); out_ref: VMEM (R*128, D)."""
    n_rows = ids_ref.shape[0]
    vocab = table_ref.shape[0]
    table = table_ref[...]                                      # (V, D), loaded once
    # Hoisted vocab iota (sublane axis) -- reused by every 128-token chunk.
    iota_v = lax.broadcasted_iota(jnp.int32, (vocab, 128), 0)

    def chunk_body(r, carry):
        # One row of the lane-dense ids block = 128 tokens; no (tile,1) relayout needed.
        ids_row = ids_ref[pl.ds(r, 1), :]                       # (1, 128) int32
        # Transposed one-hot: onehot_t[v, c] = (ids[c] == v).  Chunking keeps the live
        # one-hot at V*128 elements instead of tile*V (no vreg-file blowout / spills).
        onehot_t = (iota_v == ids_row).astype(table.dtype)      # (V, 128)
        # Exact gather as an MXU contraction.  f32 kept for bit-exactness vs jnp.take;
        # cast onehot_t/table to bf16 here if MXU pass count matters more than bits.
        chunk = jnp.einsum("vc,vd->cd", onehot_t, table,
                           preferred_element_type=jnp.float32)  # (128, D)
        start = pl.multiple_of(r * 128, 128)
        out_ref[pl.ds(start, 128), :] = chunk.astype(out_ref.dtype)
        return carry

    lax.fori_loop(0, n_rows, chunk_body, 0, unroll=n_rows <= 8)


def _embed_vmem(flat_ids, table, *, tokens_per_tile, vmem_cap):
    vocab, emb = table.shape
    n = flat_ids.shape[0]

    # Lane-dense ids layout: rows of 128 tokens, so an ids tile DMAs tile*4 bytes instead
    # of the 128x lane-padded (tile, 1) layout.
    rows_total = _round_up(n, 128) // 128
    max_rows = max(8, (tokens_per_tile // 128 // 8) * 8)        # multiple of 8 (f32 sublane)
    if rows_total <= max_rows:
        rows_per_step = rows_total
        # Give v7x's two TensorCores >= 2 grid steps when (8,128) alignment allows it.
        if rows_total % 16 == 0:
            rows_per_step = rows_total // 2
    else:
        rows_per_step = max_rows
    rows_pad = _round_up(rows_total, rows_per_step)
    n_pad = rows_pad * 128
    if n_pad != n:
        flat_ids = jnp.pad(flat_ids, (0, n_pad - n))            # pad id 0 -> zeroed padding row
    ids2d = flat_ids.reshape(rows_pad, 128)

    tile_tokens = rows_per_step * 128
    grid = (rows_pad // rows_per_step,)

    out = pl.pallas_call(
        _embed_vmem_kernel,
        out_shape=jax.ShapeDtypeStruct((n_pad, emb), table.dtype),
        grid=grid,
        in_specs=[
            pl.BlockSpec((rows_per_step, 128), lambda i: (i, 0)),   # lane-dense ids tile
            pl.BlockSpec(memory_space=pltpu.MemorySpace.VMEM),      # whole table, single copy
        ],
        out_specs=pl.BlockSpec((tile_tokens, emb), lambda i: (i, 0)),
        compiler_params=pltpu.CompilerParams(
            dimension_semantics=("parallel",),                      # disjoint output tiles
            vmem_limit_bytes=int(vmem_cap),
        ),
    )(ids2d, table)
    return out, n_pad


# ---------------------------------------------------------------------------
# Path B: large vocabulary fallback -- HBM table + scalar-prefetched ids + DMA row gather.
# ---------------------------------------------------------------------------
_GATHER_WINDOW = 8  # max in-flight row DMAs per grid step


def _embed_hbm_kernel(ids_ref, table_ref, out_ref, sems):
    """ids_ref: SMEM (n_pad,) int32 (scalar-prefetched); table_ref: HBM (V, D);
    out_ref: VMEM (tile, D); sems: DMA semaphores (W,)."""
    tile = out_ref.shape[0]
    window = sems.shape[0]
    base = pl.program_id(0) * tile

    def wait_slot(slot):
        # Descriptor shapes only size the wait; every copy is one (D,) table row.
        pltpu.make_async_copy(table_ref.at[0], out_ref.at[0], sems.at[slot]).wait()

    def issue_body(t, carry):
        tok = ids_ref[base + t]
        pltpu.make_async_copy(table_ref.at[tok], out_ref.at[t], sems.at[t % window]).start()

        @pl.when(t >= window)
        def _():
            wait_slot((t - window) % window)

        return carry

    lax.fori_loop(0, tile, issue_body, 0)

    # Drain: every issued DMA must be consumed before the pipeline writes the block back.
    def drain_body(j, carry):
        wait_slot(j)
        return carry

    lax.fori_loop(0, min(window, tile), drain_body, 0)


def _embed_hbm_gather(flat_ids, table, *, vmem_cap, tokens_per_step=512):
    vocab, emb = table.shape
    n = flat_ids.shape[0]
    tile = min(tokens_per_step, _round_up(n, 8))
    n_pad = _round_up(n, tile)
    if n_pad != n:
        flat_ids = jnp.pad(flat_ids, (0, n_pad - n))
    grid = (n_pad // tile,)
    # TODO(synk): for very long sequences, block the scalar-prefetched ids too so the SMEM
    # footprint (4*n_pad bytes, padded to a power of two) stays bounded.
    out = pl.pallas_call(
        _embed_hbm_kernel,
        out_shape=jax.ShapeDtypeStruct((n_pad, emb), table.dtype),
        grid_spec=pltpu.PrefetchScalarGridSpec(
            num_scalar_prefetch=1,
            grid=grid,
            in_specs=[pl.BlockSpec(memory_space=pl.ANY)],           # table stays in HBM
            out_specs=pl.BlockSpec((tile, emb), lambda i, ids: (i, 0)),
            scratch_shapes=[pltpu.SemaphoreType.DMA((_GATHER_WINDOW,))],
        ),
        compiler_params=pltpu.CompilerParams(
            dimension_semantics=("arbitrary",),
            vmem_limit_bytes=int(vmem_cap),
        ),
    )(flat_ids, table)
    return out, n_pad


# ---------------------------------------------------------------------------
# Public wrapper (matches WordEmbedder.forward semantics).
# ---------------------------------------------------------------------------
def word_embedder(ids, table, *, tokens_per_tile=2048, force_hbm_gather=False):
    """Pallas equivalent of nn.Embedding(vocab, emb_dim, padding_idx=0).forward(ids).

    padding_idx semantics live in the table itself (row 0 zeroed), exactly like the PyTorch
    forward (a plain row gather).  Out-of-range ids are undefined (PyTorch would raise).
    """
    vocab, emb = table.shape
    orig_shape = ids.shape
    n = int(ids.size)
    flat = ids.reshape(n).astype(jnp.int32)
    itemsize = jnp.dtype(table.dtype).itemsize

    vmem_cap = int(_vmem_capacity_bytes() * 0.8)

    tokens_per_tile = max(128, _round_up(int(tokens_per_tile), 128))
    tile_tokens = min(tokens_per_tile, _round_up(n, 128))
    needed = (vocab * emb * itemsize                 # whole-table VMEM operand (grid-constant, 1 copy)
              + 2 * tile_tokens * 4                  # double-buffered lane-dense ids tile
              + 2 * tile_tokens * emb * itemsize     # double-buffered output tile
              + vocab * 128 * 4 + 128 * emb * 4      # per-chunk one-hot + chunk result
              + (4 << 20))                           # slack: spills / pipeline bookkeeping

    # One-hot FLOPs scale linearly with vocab, so even VMEM-resident tables switch to the
    # DMA row-gather path once the vocabulary is no longer small.
    use_vmem_path = (not force_hbm_gather) and (needed <= vmem_cap) and (vocab <= 4096)

    if use_vmem_path:
        out, _ = _embed_vmem(flat, table, tokens_per_tile=tokens_per_tile, vmem_cap=vmem_cap)
    else:
        out, _ = _embed_hbm_gather(flat, table, vmem_cap=vmem_cap)
    return out[:n].reshape(*orig_shape, emb)


def make_embedding_params(key, vocab_size, emb_dim):
    # nn.Embedding default init: N(0, 1); padding_idx=0 row zeroed at init.
    w = jax.random.normal(key, (vocab_size, emb_dim), dtype=jnp.float32)
    w = w.at[0].set(0.0)
    return w


if __name__ == "__main__":
    vocab_size, emb_dim = 64, 32
    B, S = 2, 8

    key = jax.random.PRNGKey(0)
    k_w, k_ids = jax.random.split(key)

    table = make_embedding_params(k_w, vocab_size, emb_dim)
    ids = jax.random.randint(k_ids, (B, S), 0, vocab_size, dtype=jnp.int32)
    ids = ids.at[0, 0].set(0)          # exercise the zeroed padding row

    ref = jnp.take(table, ids, axis=0)

    # Default path: VMEM-resident table + lane-dense ids + chunked one-hot MXU gather.
    out = jax.block_until_ready(word_embedder(ids, table))
    assert out.shape == (B, S, emb_dim)
    assert out.dtype == table.dtype
    assert bool(jnp.all(out[0, 0] == 0.0)), "padding_idx row must be exactly zero"
    assert jnp.allclose(out, ref, rtol=1e-6, atol=1e-6), "VMEM path mismatch vs reference"

    # Forced fallback path: HBM-resident table + scalar-prefetched ids + DMA row gather.
    out_hbm = jax.block_until_ready(word_embedder(ids, table, force_hbm_gather=True))
    assert out_hbm.shape == (B, S, emb_dim)
    assert jnp.array_equal(out_hbm, ref), "HBM gather path mismatch vs reference"

    print("KERNEL_OK")
</pallas_src>

<mosaic_0001>
module attributes {stable_mosaic.version = 11 : i64} {
  func.func @_embed_vmem_kernel(%arg0: i32, %arg1: memref<1x128xi32, #tpu.memory_space<vmem>>, %arg2: memref<64x32xf32, #tpu.memory_space<vmem>>, %arg3: memref<128x32xf32, #tpu.memory_space<vmem>>) attributes {dimension_semantics = [#tpu.dimension_semantics<parallel>], iteration_bounds = array<i64: 1>, scalar_prefetch = 0 : i64, scratch_operands = 0 : i64, tpu.core_type = #tpu.core_type<tc>, window_params = [{transform_indices = @transform_0, window_bounds = array<i64: 1, 128>}, {pipeline_mode = #tpu.pipeline_mode<synchronous>, transform_indices = @transform_1, window_bounds = array<i64: 64, 32>}, {transform_indices = @transform_2, window_bounds = array<i64: 128, 32>}]} {
    %c0 = arith.constant 0 : index
    %c0_0 = arith.constant 0 : index
    %0 = vector.load %arg2[%c0, %c0_0] : memref<64x32xf32, #tpu.memory_space<vmem>>, vector<64x32xf32>
    %1 = tpu.iota {dimensions = array<i32: 0>} : vector<64x128xi32>
    %c0_i32 = arith.constant 0 : i32
    %2 = arith.index_cast %c0_i32 : i32 to index
    %c0_1 = arith.constant 0 : index
    %3 = vector.load %arg1[%2, %c0_1] : memref<1x128xi32, #tpu.memory_space<vmem>>, vector<1x128xi32>
    %4 = vector.broadcast %3 : vector<1x128xi32> to vector<64x128xi32>
    %5 = arith.cmpi eq, %1, %4 : vector<64x128xi32>
    %6 = arith.extui %5 : vector<64x128xi1> to vector<64x128xi32>
    %7 = arith.sitofp %6 : vector<64x128xi32> to vector<64x128xf32>
    "tpu.trace_start"() <{level = 10 : i32, message = "vc,vd->cd"}> : () -> ()
    %cst = arith.constant dense<0.000000e+00> : vector<128x32xf32>
    %8 = tpu.matmul %7, %0, %cst {dimension_numbers = #tpu.dot_dimension_numbers<[0], [0], [1], [1], [0, 1, 1, 1], [], []>} : vector<64x128xf32>, vector<64x32xf32>, vector<128x32xf32> -> vector<128x32xf32>
    "tpu.trace_stop"() : () -> ()
    %c128_i32 = arith.constant 128 : i32
    %9 = arith.muli %c0_i32, %c128_i32 : i32
    %10 = tpu.assume_multiple %9, 128 : i32
    %11 = arith.index_cast %10 : i32 to index
    %c0_2 = arith.constant 0 : index
    %12 = vector.load %arg3[%11, %c0_2] : memref<128x32xf32, #tpu.memory_space<vmem>>, vector<128x32xf32>
    tpu.vector_store %arg3[%11, %c0_2], %8 {strides = array<i32>} : memref<128x32xf32, #tpu.memory_space<vmem>>, vector<128x32xf32>,
    %c1_i32 = arith.constant 1 : i32
    return
  }
  func.func @transform_0(%arg0: i32) -> (i32, i32) {
    %c0_i32 = arith.constant 0 : i32
    %c0_i32_0 = arith.constant 0 : i32
    return %arg0, %c0_i32 : i32, i32
  }
  func.func @transform_1(%arg0: i32) -> (i32, i32) {
    %c0_i32 = arith.constant 0 : i32
    %c0_i32_0 = arith.constant 0 : i32
    %c0_i32_1 = arith.constant 0 : i32
    return %c0_i32, %c0_i32_0 : i32, i32
  }
  func.func @transform_2(%arg0: i32) -> (i32, i32) {
    %c0_i32 = arith.constant 0 : i32
    %c0_i32_0 = arith.constant 0 : i32
    return %arg0, %c0_i32 : i32, i32
  }
}

</mosaic_0001>

<llo_original>
// kernel: tpu_custom_call.1
$region0: #{tpu_custom_call.1}
  #allocation0 [shape = 'u32[]', space=smem, size = 0x4, offset = 0x4, fixed_abs, tag = 'smem constant byte address 0x4 - core index']
  #allocation1 [shape = 'u32[72,128]{1,0:T(1,128)}', space=vmem, size = 0x9000, scoped, tag = 'internal scratch']
  %s0 = inlined_call_operand.vmem [shape: s32[1,128], index: 0, kind: input, shape index: {}]
  %s1 = inlined_call_operand.vmem [shape: f32[64,32], index: 1, kind: input, shape index: {}]
  %s2 = inlined_call_operand.vmem [shape: f32[128,32], index: 2, kind: output, shape index: {}]
  %s3 = sld [smem:[#allocation0]]
  $region18: #{tpu_custom_call.1} parent=0
    _
  %s5 = ssub.s32 1, %s3
  %s6 = scalar_select 0, %s5, %s3
  // Predicated region
  $region2: #{tpu_custom_call.1} parent=0 // pred_check
    _
  $region3: #{tpu_custom_call.1} parent=0 // pred_check_branch
    %8 = sbr.rel (0) target = $region5
  $region4: #{tpu_custom_call.1} parent=0 // pred_region
    _
  $region5: #{tpu_custom_call.1} parent=0 // pred_fallthru
    _
  // Predicated region
  $region6: #{tpu_custom_call.1} parent=0 // pred_check
    _
  $region7: #{tpu_custom_call.1} parent=0 // pred_check_branch
    %10 = sbr.rel (0) target = $region9
  $region8: #{tpu_custom_call.1} parent=0 // pred_region
    _
  $region9: #{tpu_custom_call.1} parent=0 // pred_fallthru
    _
  %v11 = vld [vmem:[%s1] sm:$0xff]
  %v12 = vld [vmem:[%s1 + $0x8] sm:$0xff]
  %v13 = vld [vmem:[%s1 + $0x10] sm:$0xff]
  %v14 = vld [vmem:[%s1 + $0x18] sm:$0xff]
  %v15 = vld [vmem:[%s1 + $0x20] sm:$0xff]
  %v16 = vld [vmem:[%s1 + $0x28] sm:$0xff]
  %v17 = vld [vmem:[%s1 + $0x30] sm:$0xff]
  %v18 = vld [vmem:[%s1 + $0x38] sm:$0xff]
  %v19 = vlaneseq
  %v20 = vshrl.u32 %v19, 7
  %v21 = vadd.s32 %v20, 8
  %v22 = vadd.s32 %v20, 16
  %v23 = vadd.s32 %v20, 24
  %v24 = vadd.s32 %v20, 32
  %v25 = vadd.s32 %v20, 40
  %v26 = vadd.s32 %v20, 48
  %v27 = vadd.s32 %v20, 56
  %v28 = vld [vmem:[%s0] sm:$0x1]
  %v29 = vperm.slane %v28, 0
  %vm30 = vcmp.eq.s32.totalorder %v20, %v29
  %vm31 = vcmp.eq.s32.totalorder %v21, %v29
  %vm32 = vcmp.eq.s32.totalorder %v22, %v29
  %vm33 = vcmp.eq.s32.totalorder %v23, %v29
  %vm34 = vcmp.eq.s32.totalorder %v24, %v29
  %vm35 = vcmp.eq.s32.totalorder %v25, %v29
  %vm36 = vcmp.eq.s32.totalorder %v26, %v29
  %vm37 = vcmp.eq.s32.totalorder %v27, %v29
  %v38 = vsel %vm30, 1, 0
  %v39 = vsel %vm31, 1, 0
  %v40 = vsel %vm32, 1, 0
  %v41 = vsel %vm33, 1, 0
  %v42 = vsel %vm34, 1, 0
  %v43 = vsel %vm35, 1, 0
  %v44 = vsel %vm36, 1, 0
  %v45 = vsel %vm37, 1, 0
  %v46 = vcvt.s32.f32 %v38
  %v47 = vcvt.s32.f32 %v39
  %v48 = vcvt.s32.f32 %v40
  %v49 = vcvt.s32.f32 %v41
  %v50 = vcvt.s32.f32 %v42
  %v51 = vcvt.s32.f32 %v43
  %v52 = vcvt.s32.f32 %v44
  %v53 = vcvt.s32.f32 %v45
  %54 = vxpose.xlu0.b32.start [1/16] %v46, 128
  %55 = vxpose.xlu0.b32.cont [2/16] %v47, 128
  %56 = vxpose.xlu0.b32.cont [3/16] %v48, 128
  %57 = vxpose.xlu0.b32.cont [4/16] %v49, 128
  %58 = vxpose.xlu0.b32.cont [5/16] %v50, 128
  %59 = vxpose.xlu0.b32.cont [6/16] %v51, 128
  %60 = vxpose.xlu0.b32.cont [7/16] %v52, 128
  %61 = vxpose.xlu0.b32.cont [8/16] %v53, 128
  %62 = vxpose.xlu0.b32.cont [9/16] 0.0, 128
  %63 = vxpose.xlu0.b32.cont [10/16] 0.0, 128
  %64 = vxpose.xlu0.b32.cont [11/16] 0.0, 128
  %65 = vxpose.xlu0.b32.cont [12/16] 0.0, 128
  %66 = vxpose.xlu0.b32.cont [13/16] 0.0, 128
  %67 = vxpose.xlu0.b32.cont [14/16] 0.0, 128
  %68 = vxpose.xlu0.b32.cont [15/16] 0.0, 128
  %69 = vxpose.xlu0.b32.end [16/16] 0.0, 128
  %v70 = vpop.trf.xlu0
  %v71 = vpop.trf.xlu0
  %v72 = vpop.trf.xlu0
  %v73 = vpop.trf.xlu0
  %v74 = vpop.trf.xlu0
  %v75 = vpop.trf.xlu0
  %v76 = vpop.trf.xlu0
  %v77 = vpop.trf.xlu0
  %v78 = vpop.trf.xlu0
  %v79 = vpop.trf.xlu0
  %v80 = vpop.trf.xlu0
  %v81 = vpop.trf.xlu0
  %v82 = vpop.trf.xlu0
  %v83 = vpop.trf.xlu0
  %v84 = vpop.trf.xlu0
  %v85 = vpop.trf.xlu0
  %vm86 = vcmask 523264
  %v88 = vsel %vm86, %v70, 0
  %v91 = vsel %vm86, %v71, 0
  %v94 = vsel %vm86, %v72, 0
  %v97 = vsel %vm86, %v73, 0
  %v100 = vsel %vm86, %v74, 0
  %v103 = vsel %vm86, %v75, 0
  %v106 = vsel %vm86, %v76, 0
  %v109 = vsel %vm86, %v77, 0
  %v112 = vsel %vm86, %v78, 0
  %v115 = vsel %vm86, %v79, 0
  %v118 = vsel %vm86, %v80, 0
  %v121 = vsel %vm86, %v81, 0
  %v124 = vsel %vm86, %v82, 0
  %v127 = vsel %vm86, %v83, 0
  %v130 = vsel %vm86, %v84, 0
  %v133 = vsel %vm86, %v85, 0
  %135 = vmatpush.msra.mxu0 0.0
  %136 = vmatpush.msra.mxu0 0.0
  %137 = vmatpush.msra.mxu0 0.0
  %138 = vmatpush.msra.mxu0 0.0
  %139 = vmatpush.msra.mxu0 0.0
  %140 = vmatpush.msra.mxu0 0.0
  %141 = vmatpush.msra.mxu0 0.0
  %142 = vmatpush.msra.mxu0 0.0
  %143 = vmatpush.msra.mxu0 %v18
  %144 = vmatpush.msra.mxu0 %v17
  %145 = vmatpush.msra.mxu0 %v16
  %146 = vmatpush.msra.mxu0 %v15
  %147 = vmatpush.msra.mxu0 %v14
  %148 = vmatpush.msra.mxu0 %v13
  %149 = vmatpush.msra.mxu0 %v12
  %150 = vmatpush.msra.mxu0 %v11
  %151 = vmatmul.f32.gmra.mxu0 %v88
  %v152 = vpop.f32.mrf.mxu0
  %v153 = vadd.f32 0.0, %v152
  %154 = vmatmul.f32.gmra.mxu0 %v91
  %v155 = vpop.f32.mrf.mxu0
  %v156 = vadd.f32 0.0, %v155
  %157 = vmatmul.f32.gmra.mxu0 %v94
  %v158 = vpop.f32.mrf.mxu0
  %v159 = vadd.f32 0.0, %v158
  %160 = vmatmul.f32.gmra.mxu0 %v97
  %v161 = vpop.f32.mrf.mxu0
  %v162 = vadd.f32 0.0, %v161
  %163 = vmatmul.f32.gmra.mxu0 %v100
  %v164 = vpop.f32.mrf.mxu0
  %v165 = vadd.f32 0.0, %v164
  %166 = vmatmul.f32.gmra.mxu0 %v103
  %v167 = vpop.f32.mrf.mxu0
  %v168 = vadd.f32 0.0, %v167
  %169 = vmatmul.f32.gmra.mxu0 %v106
  %v170 = vpop.f32.mrf.mxu0
  %v171 = vadd.f32 0.0, %v170
  %172 = vmatmul.f32.gmra.mxu0 %v109
  %v173 = vpop.f32.mrf.mxu0
  %v174 = vadd.f32 0.0, %v173
  %175 = vmatmul.f32.gmra.mxu0 %v112
  %v176 = vpop.f32.mrf.mxu0
  %v177 = vadd.f32 0.0, %v176
  %178 = vmatmul.f32.gmra.mxu0 %v115
  %v179 = vpop.f32.mrf.mxu0
  %v180 = vadd.f32 0.0, %v179
  %181 = vmatmul.f32.gmra.mxu0 %v118
  %v182 = vpop.f32.mrf.mxu0
  %v183 = vadd.f32 0.0, %v182
  %184 = vmatmul.f32.gmra.mxu0 %v121
  %v185 = vpop.f32.mrf.mxu0
  %v186 = vadd.f32 0.0, %v185
  %187 = vmatmul.f32.gmra.mxu0 %v124
  %v188 = vpop.f32.mrf.mxu0
  %v189 = vadd.f32 0.0, %v188
  %190 = vmatmul.f32.gmra.mxu0 %v127
  %v191 = vpop.f32.mrf.mxu0
  %v192 = vadd.f32 0.0, %v191
  %193 = vmatmul.f32.gmra.mxu0 %v130
  %v194 = vpop.f32.mrf.mxu0
  %v195 = vadd.f32 0.0, %v194
  %196 = vmatmul.f32.gmra.mxu0 %v133
  %v197 = vpop.f32.mrf.mxu0
  %v198 = vadd.f32 0.0, %v197
  %199 = vdwg.mxu0
  %vm200 = vcmask 261120
  %201 = vst.msk [vmem:[%s2] sm:$0xff] %vm200, %v153
  %202 = vst.msk [vmem:[%s2 + $0x8] sm:$0xff] %vm200, %v156
  %203 = vst.msk [vmem:[%s2 + $0x10] sm:$0xff] %vm200, %v159
  %204 = vst.msk [vmem:[%s2 + $0x18] sm:$0xff] %vm200, %v162
  %205 = vst.msk [vmem:[%s2 + $0x20] sm:$0xff] %vm200, %v165
  %206 = vst.msk [vmem:[%s2 + $0x28] sm:$0xff] %vm200, %v168
  %207 = vst.msk [vmem:[%s2 + $0x30] sm:$0xff] %vm200, %v171
  %208 = vst.msk [vmem:[%s2 + $0x38] sm:$0xff] %vm200, %v174
  %209 = vst.msk [vmem:[%s2 + $0x40] sm:$0xff] %vm200, %v177
  %210 = vst.msk [vmem:[%s2 + $0x48] sm:$0xff] %vm200, %v180
  %211 = vst.msk [vmem:[%s2 + $0x50] sm:$0xff] %vm200, %v183
  %212 = vst.msk [vmem:[%s2 + $0x58] sm:$0xff] %vm200, %v186
  %213 = vst.msk [vmem:[%s2 + $0x60] sm:$0xff] %vm200, %v189
  %214 = vst.msk [vmem:[%s2 + $0x68] sm:$0xff] %vm200, %v192
  %215 = vst.msk [vmem:[%s2 + $0x70] sm:$0xff] %vm200, %v195
  %216 = vst.msk [vmem:[%s2 + $0x78] sm:$0xff] %vm200, %v198
  // Predicated region
  $region10: #{tpu_custom_call.1} parent=0 // pred_check
    _
  $region11: #{tpu_custom_call.1} parent=0 // pred_check_branch
    %218 = sbr.rel (0) target = $region13
  $region12: #{tpu_custom_call.1} parent=0 // pred_region
    _
  $region13: #{tpu_custom_call.1} parent=0 // pred_fallthru
    _
  // Predicated region
  $region14: #{tpu_custom_call.1} parent=0 // pred_check
    _
  $region15: #{tpu_custom_call.1} parent=0 // pred_check_branch
    %220 = sbr.rel (0) target = $region17
  $region16: #{tpu_custom_call.1} parent=0 // pred_region
    _
  $region17: #{tpu_custom_call.1} parent=0 // pred_fallthru
    _

</llo_original>
